<compile_context>
chip_gen: v6e
topology: v6e:2x2x1
jax: 0.10.0
libtpu: 0.0.40
codegen_flags: <defaults>
</compile_context>

<pallas_src>
import functools

import jax
import jax.numpy as jnp
from jax.experimental import pallas as pl
from jax.experimental.pallas import tpu as pltpu


def _copy_rows_kernel(x_ref, o_ref):
    # x_ref / o_ref blocks are both (ROWS, F): straight copy, ld -> st.
    o_ref[...] = x_ref[...]


def _choose_rows(nt, f, itemsize):
    """Pick a sublane-aligned row-tile count targeting ~2 MiB tiles."""
    target_bytes = 2 * 1024 * 1024
    rows = target_bytes // max(1, f * itemsize)
    rows = (rows // 8) * 8          # multiple of 8 sublanes
    rows = max(8, rows)
    if rows >= nt:
        return nt                   # single full-extent block (always legal)
    return rows


@functools.lru_cache(maxsize=None)
def _build_row_copy(nt, f, dtype, rows):
    """Builds the pallas_call for a (nt, f) flat-row streaming copy."""
    grid = (pl.cdiv(nt, rows),)
    return pl.pallas_call(
        _copy_rows_kernel,
        out_shape=jax.ShapeDtypeStruct((nt, f), dtype),
        grid_spec=pltpu.PrefetchScalarGridSpec(
            num_scalar_prefetch=0,
            grid=grid,
            in_specs=[pl.BlockSpec((rows, f), lambda i: (i, 0))],
            out_specs=pl.BlockSpec((rows, f), lambda i: (i, 0)),
        ),
        compiler_params=pltpu.CompilerParams(
            dimension_semantics=("parallel",),
            vmem_limit_bytes=64 * 1024 * 1024,
        ),
    )


class TimeAndBatchUnflattener:
    """JAX/Pallas port of the PyTorch TimeAndBatchUnflattener."""

    def __init__(self, batch_first=False):
        self.batch_first = batch_first

    def __call__(self, x, hx=None):
        return self.unflatten(x, hx)

    def unflatten(self, x, hx=None):
        nt = x.shape[0]
        if hx is None:
            n, t = nt, 1
        else:
            n = hx.shape[-2]
            if nt % n != 0:
                raise ValueError(
                    f"leading dim {nt} is not divisible by batch size {n}")
            t = nt // n

        feature_dims = x.shape[1:]
        F = 1
        for d in feature_dims:
            F *= d
        # Note: keep the fused feature size F a multiple of 128 for
        # lane-dense (unmasked) stores; F != multiple-of-128 is still
        # correct, just slower.
        x2d = x.reshape(nt, F)

        rows = _choose_rows(nt, F, x2d.dtype.itemsize)
        out2d = _build_row_copy(nt, F, x2d.dtype, rows)(x2d)

        # The unflatten itself is metadata-only (byte-identical layout).
        if self.batch_first:
            return out2d.reshape(n, t, *feature_dims)
        return out2d.reshape(t, n, *feature_dims)

    def flatten(self, x):
        return x.reshape(-1, *x.shape[2:])


if __name__ == "__main__":
    key = jax.random.PRNGKey(0)
    k1, k2 = jax.random.split(key)

    # Small, TPU-friendly shapes: N*T = 16 rows, feature dims (4, 32) -> F=128.
    n, t, hidden = 8, 2, 16
    x = jax.random.normal(k1, (n * t, 4, 32), dtype=jnp.float32)
    # hx like an RNN hidden state: (num_layers, n, hidden); only shape[-2] used.
    hx = jax.random.normal(k2, (1, n, hidden), dtype=jnp.float32)

    # batch_first=False (default): (t, n, 4, 32)
    mod = TimeAndBatchUnflattener(batch_first=False)
    out = mod(x, hx)
    jax.block_until_ready(out)
    ref = x.reshape(t, n, 4, 32)
    assert out.shape == ref.shape and out.dtype == ref.dtype
    assert bool(jnp.array_equal(out, ref))

    # batch_first=True: (n, t, 4, 32)
    mod_bf = TimeAndBatchUnflattener(batch_first=True)
    out_bf = mod_bf(x, hx)
    jax.block_until_ready(out_bf)
    ref_bf = x.reshape(n, t, 4, 32)
    assert out_bf.shape == ref_bf.shape
    assert bool(jnp.array_equal(out_bf, ref_bf))

    # hx=None path: (1, n*t, 4, 32)
    out_none = mod(x, None)
    jax.block_until_ready(out_none)
    ref_none = x.reshape(1, n * t, 4, 32)
    assert out_none.shape == ref_none.shape
    assert bool(jnp.array_equal(out_none, ref_none))

    # A larger case exercising multiple row tiles and a partial last block.
    k3 = jax.random.PRNGKey(1)
    n2, t2 = 3, 700  # nt = 2100 rows, F = 256 -> several 8-aligned tiles
    x_big = jax.random.normal(k3, (n2 * t2, 2, 128), dtype=jnp.float32)
    hx_big = jnp.zeros((1, n2, 8), dtype=jnp.float32)
    out_big = mod(x_big, hx_big)
    jax.block_until_ready(out_big)
    assert bool(jnp.array_equal(out_big, x_big.reshape(t2, n2, 2, 128)))

    print("KERNEL_OK")
</pallas_src>

<mosaic_0001>
module attributes {stable_mosaic.version = 11 : i64} {
  func.func @_copy_rows_kernel(%arg0: i32, %arg1: memref<16x128xf32, #tpu.memory_space<vmem>>, %arg2: memref<16x128xf32, #tpu.memory_space<vmem>>) attributes {dimension_semantics = [#tpu.dimension_semantics<parallel>], iteration_bounds = array<i64: 1>, scalar_prefetch = 0 : i64, scratch_operands = 0 : i64, tpu.core_type = #tpu.core_type<tc>, window_params = [{transform_indices = @transform_0, window_bounds = array<i64: 16, 128>}, {transform_indices = @transform_1, window_bounds = array<i64: 16, 128>}]} {
    %c0 = arith.constant 0 : index
    %c0_0 = arith.constant 0 : index
    %0 = vector.load %arg1[%c0, %c0_0] : memref<16x128xf32, #tpu.memory_space<vmem>>, vector<16x128xf32>
    %c0_1 = arith.constant 0 : index
    %c0_2 = arith.constant 0 : index
    %1 = vector.load %arg2[%c0_1, %c0_2] : memref<16x128xf32, #tpu.memory_space<vmem>>, vector<16x128xf32>
    tpu.vector_store %arg2[%c0_1, %c0_2], %0 {strides = array<i32>} : memref<16x128xf32, #tpu.memory_space<vmem>>, vector<16x128xf32>,
    return
  }
  func.func @transform_0(%arg0: i32) -> (i32, i32) {
    %c0_i32 = arith.constant 0 : i32
    %c0_i32_0 = arith.constant 0 : i32
    return %arg0, %c0_i32 : i32, i32
  }
  func.func @transform_1(%arg0: i32) -> (i32, i32) {
    %c0_i32 = arith.constant 0 : i32
    %c0_i32_0 = arith.constant 0 : i32
    return %arg0, %c0_i32 : i32, i32
  }
}

</mosaic_0001>

<llo_original>
// kernel: tpu_custom_call.1
$region0: #{tpu_custom_call.1}
  #allocation0 [shape = 'u32[]', space=smem, size = 0x4, offset = 0x4, fixed_abs, tag = 'smem constant byte address 0x4 - core index']
  #allocation1 [shape = 'u32[144,128]{1,0:T(1,128)}', space=vmem, size = 0x12000, scoped, tag = 'internal scratch']
  %s0 = inlined_call_operand.hbm [shape: f32[16,128], index: 0, kind: input, shape index: {}]
  %s1 = inlined_call_operand.hbm [shape: f32[16,128], index: 1, kind: output, shape index: {}]
  %s2 = sld [smem:[#allocation0]]
  $region18: #{tpu_custom_call.1} parent=0
    _
  %s4 = ssub.s32 1, %s2
  %s5 = scalar_select 0, %s4, %s2
  $region1: #{tpu_custom_call.1} parent=0
    #allocation2 [shape = 'u8[8192]{0}', space=vmem, size = 0x2000, scoped, tag = 'input window, operand 0, single buffered']
    #allocation3 [shape = 's32[1]{0}', space=sflag, size = 0x4, scoped, tag = 'scoped memory for tpu_custom_call.1']
    #allocation4 [shape = 's32[1]{0}', space=sflag, size = 0x4, scoped, tag = 'scoped memory for tpu_custom_call.1']
    #allocation5 [shape = 'u8[8192]{0}', space=vmem, size = 0x2000, scoped, tag = 'output window, operand 0, single buffered']
    %6 = vsyncpa [#allocation3], 0
    %7 = vsyncpa [#allocation4], 0
    // Predicated region
    $region2: #{tpu_custom_call.1} parent=1 // pred_check
      _
    $region3: #{tpu_custom_call.1} parent=1 // pred_check_branch
      %9 = sbr.rel (0) target = $region5
    $region4: #{tpu_custom_call.1} parent=1 // pred_region
      %s11 = ssub.s32 256, 256
      %12 = vsyncadd [#allocation3], %s11
      %s13 = sshll.u32 [#allocation2], 4
      %s14 = int_to_ptr.vmem [resolvable:$true] %s13
      %19 = dma.hbm_to_vmem [thread:$0]  %s0, 256, %s14, [#allocation3], 128, 128, 8
    $region5: #{tpu_custom_call.1} parent=1 // pred_fallthru
      _
    // Predicated region
    $region6: #{tpu_custom_call.1} parent=1 // pred_check
      _
    $region7: #{tpu_custom_call.1} parent=1 // pred_check_branch
      %21 = sbr.rel (0) target = $region9
    $region8: #{tpu_custom_call.1} parent=1 // pred_region
      %22 = dma.done [#allocation3], 256
    $region9: #{tpu_custom_call.1} parent=1 // pred_fallthru
      _
    %v23 = vld [vmem:[#allocation2] sm:$0xff]
    %v24 = vld [vmem:[#allocation2 + $0x8] sm:$0xff]
    %25 = vst [vmem:[#allocation5] sm:$0xff] %v23
    %26 = vst [vmem:[#allocation5 + $0x8] sm:$0xff] %v24
    // Predicated region
    $region10: #{tpu_custom_call.1} parent=1 // pred_check
      _
    $region11: #{tpu_custom_call.1} parent=1 // pred_check_branch
      %28 = sbr.rel (0) target = $region13
    $region12: #{tpu_custom_call.1} parent=1 // pred_region
      %s30 = ssub.s32 256, 256
      %31 = vsyncadd [#allocation4], %s30
      %s32 = sshll.u32 [#allocation5], 4
      %s33 = int_to_ptr.vmem [resolvable:$true] %s32
      %38 = dma.vmem_to_hbm [thread:$0]  %s33, 256, %s1, [#allocation4], 128, 128, 8
    $region13: #{tpu_custom_call.1} parent=1 // pred_fallthru
      _
    // Predicated region
    $region14: #{tpu_custom_call.1} parent=1 // pred_check
      _
    $region15: #{tpu_custom_call.1} parent=1 // pred_check_branch
      %40 = sbr.rel (0) target = $region17
    $region16: #{tpu_custom_call.1} parent=1 // pred_region
      %41 = dma.done [#allocation4], 256
    $region17: #{tpu_custom_call.1} parent=1 // pred_fallthru
      _
    %42 = vsyncpa [#allocation3], 1
    %43 = vsyncpa [#allocation4], 1

</llo_original>
